<compile_context>
chip_gen: v7x
topology: tpu7x:2x2x1
jax: 0.10.0
libtpu: 0.0.40
codegen_flags: <defaults>
</compile_context>

<pallas_src>
import functools
import math

import jax
import jax.numpy as jnp
from jax import lax
from jax.experimental import pallas as pl
from jax.experimental.pallas import tpu as pltpu


# ---------------------------------------------------------------------------
# Parameter / matrix construction (plain JAX glue)
# ---------------------------------------------------------------------------
def gaussian_1d(sigma: float, truncated: float = 4.0) -> jnp.ndarray:
    """MONAI gaussian_1d with approx='erf', normalize=False (module defaults)."""
    tail = int(max(float(sigma) * truncated, 0.5) + 0.5)
    x = jnp.arange(-tail, tail + 1, dtype=jnp.float32)
    denom = float(sigma) * math.sqrt(2.0)
    out = 0.5 * (jax.scipy.special.erf((x + 0.5) / denom)
                 - jax.scipy.special.erf((x - 0.5) / denom))
    return jnp.clip(out, 0.0, None).astype(jnp.float32)


def blur_matrix(n: int, w: jnp.ndarray) -> jnp.ndarray:
    """B such that (B @ x)[i] = sum_k w[k] * x[i + k - K//2], zero padded."""
    k = w.shape[0]
    c = k // 2
    idx = jnp.arange(n)
    off = idx[None, :] - idx[:, None] + c
    valid = (off >= 0) & (off < k)
    return jnp.where(valid, w[jnp.clip(off, 0, k - 1)], 0.0).astype(jnp.float32)


def _round_up(x: int, m: int) -> int:
    return ((x + m - 1) // m) * m


def _pick_batch_block(n: int, hp: int, wp: int,
                      budget_bytes: int = 4 << 20, max_block: int = 8) -> int:
    """Largest divisor of n (<= max_block) whose I/J/flow block fits the budget,
    while keeping >= 2 grid steps when possible (keeps both v7x TCs busy)."""
    per_plane = 4 * 4 * hp * wp        # I + J + 2 flow channels, f32
    best = 1
    for b in range(1, min(n, max_block) + 1):
        if n % b:
            continue
        if b * per_plane > budget_bytes:
            break
        if n > 1 and n // b < 2:
            continue
        best = b
    return best


# ---------------------------------------------------------------------------
# Pallas kernel: one block of batch planes per grid step, all resident in VMEM
# ---------------------------------------------------------------------------
def optical_flow_kernel(i_ref, j_ref, bh_ref, bwT_ref, out_ref, *, eps: float):
    I = i_ref[...]          # (B, H, W)  fixed image block   (padded H, W)
    J = j_ref[...]          # (B, H, W)  moving image block
    Bh = bh_ref[...]        # (H, H)     gaussian blur along H
    BwT = bwT_ref[...]      # (W, W)     gaussian blur along W (pre-transposed)
    B, H, W = I.shape

    # --- zero-padded 3-tap central differences of J (XLU rolls + VPU masks) --
    # result[i] = x[i+1]  ==  roll(x, size-1); the single wrapped element is
    # masked to 0, which is exactly the zero-padding convention.
    row = lax.broadcasted_iota(jnp.int32, (B, H, W), 1)
    col = lax.broadcasted_iota(jnp.int32, (B, H, W), 2)
    up    = jnp.where(row == H - 1, 0.0, pltpu.roll(J, H - 1, axis=1))  # J[h+1]
    down  = jnp.where(row == 0,     0.0, pltpu.roll(J, 1,     axis=1))  # J[h-1]
    right = jnp.where(col == W - 1, 0.0, pltpu.roll(J, W - 1, axis=2))  # J[w+1]
    left  = jnp.where(col == 0,     0.0, pltpu.roll(J, 1,     axis=2))  # J[w-1]
    gy = 0.5 * (up - down)        # dJ/dH
    gx = 0.5 * (right - left)     # dJ/dW

    # --- gauss-newton flow update: one reciprocal + two multiplies -----------
    diff = I - J
    denom = gy * gy + gx * gx + diff * diff
    ok = denom >= eps
    inv = pl.reciprocal(jnp.where(ok, denom, 1.0), approx=False)
    num = jnp.where(ok, diff * inv, 0.0)
    fy = num * gy
    fx = num * gx

    # --- separable gaussian blur (zero padding), channels + batch fused ------
    # W pass: one [2*B*H, W] @ [W, W] matmul covers both channels of all planes.
    F = jnp.concatenate([fy.reshape(B * H, W), fx.reshape(B * H, W)], axis=0)
    Fw = jnp.dot(F, BwT, preferred_element_type=jnp.float32)      # (2*B*H, W)
    # H pass: per plane, both channels fused along columns: [H, H] @ [H, 2W].
    for b in range(B):
        G = jnp.concatenate([Fw[b * H:(b + 1) * H, :],
                             Fw[(B + b) * H:(B + b + 1) * H, :]], axis=1)
        O = jnp.dot(Bh, G, preferred_element_type=jnp.float32)    # (H, 2W)
        out_ref[b, 0] = O[:, :W]
        out_ref[b, 1] = O[:, W:]


def optical_flow(I: jnp.ndarray, J: jnp.ndarray, *,
                 sigma: float = 2.0, eps: float = 1e-3) -> jnp.ndarray:
    """I, J: [N, 1, H, W]  ->  flow: [N, 2, H, W]  (gauss-newton method)."""
    N, C, H, W = I.shape
    assert C == 1, "OpticalFlow expects single-channel images [N, 1, H, W]"
    Hp = _round_up(H, 8)      # sublane multiple
    Wp = _round_up(W, 128)    # lane multiple -> lane-dense, unmasked stores

    Iw = I[:, 0].astype(jnp.float32)
    Jw = J[:, 0].astype(jnp.float32)
    if (Hp, Wp) != (H, W):
        # Zero padding is transparent: padded pixels have diff == 0 so their
        # flow is exactly 0, and zero-padded gradient/blur of the padded image
        # restricted to [:H, :W] equals the unpadded computation.
        Iw = jnp.pad(Iw, ((0, 0), (0, Hp - H), (0, Wp - W)))
        Jw = jnp.pad(Jw, ((0, 0), (0, Hp - H), (0, Wp - W)))

    w = gaussian_1d(sigma)
    Bh = blur_matrix(Hp, w)            # (Hp, Hp)
    BwT = blur_matrix(Wp, w).T         # (Wp, Wp)

    B_blk = _pick_batch_block(N, Hp, Wp)
    grid = (N // B_blk,)

    # explicit scoped-VMEM budget: double-buffered I/J/out blocks,
    # single-buffered blur matrices, elementwise temporaries, 2x headroom.
    blk_plane = 4 * B_blk * Hp * Wp
    io_bytes = 2 * (blk_plane + blk_plane + 2 * blk_plane)
    const_bytes = 4 * (Hp * Hp + Wp * Wp)
    tmp_bytes = 14 * blk_plane
    vmem_limit = int(min(max(2 * (io_bytes + const_bytes + tmp_bytes), 8 << 20),
                         64 << 20))

    kernel = functools.partial(optical_flow_kernel, eps=eps)
    flow = pl.pallas_call(
        kernel,
        out_shape=jax.ShapeDtypeStruct((N, 2, Hp, Wp), jnp.float32),
        grid_spec=pltpu.PrefetchScalarGridSpec(
            num_scalar_prefetch=0,
            grid=grid,
            in_specs=[
                pl.BlockSpec((B_blk, Hp, Wp), lambda n: (n, 0, 0)),   # I
                pl.BlockSpec((B_blk, Hp, Wp), lambda n: (n, 0, 0)),   # J
                # constant blur matrices: fetched once, single-buffered
                pl.BlockSpec((Hp, Hp), lambda n: (0, 0),
                             pipeline_mode=pl.Buffered(1)),           # Bh
                pl.BlockSpec((Wp, Wp), lambda n: (0, 0),
                             pipeline_mode=pl.Buffered(1)),           # Bw^T
            ],
            out_specs=pl.BlockSpec((B_blk, 2, Hp, Wp), lambda n: (n, 0, 0, 0)),
        ),
        compiler_params=pltpu.CompilerParams(
            dimension_semantics=("parallel",),
            vmem_limit_bytes=vmem_limit),
    )(Iw, Jw, Bh, BwT)

    return flow[:, :, :H, :W]


# ---------------------------------------------------------------------------
# Pure-JAX reference (same semantics) for a correctness check
# ---------------------------------------------------------------------------
def optical_flow_ref(I, J, *, sigma=2.0, eps=1e-3):
    Iw, Jw = I[:, 0].astype(jnp.float32), J[:, 0].astype(jnp.float32)
    N, H, W = Jw.shape
    zr = jnp.zeros((N, 1, W), jnp.float32)
    zc = jnp.zeros((N, H, 1), jnp.float32)
    gy = 0.5 * (jnp.concatenate([Jw[:, 1:, :], zr], axis=1)
                - jnp.concatenate([zr, Jw[:, :-1, :]], axis=1))
    gx = 0.5 * (jnp.concatenate([Jw[:, :, 1:], zc], axis=2)
                - jnp.concatenate([zc, Jw[:, :, :-1]], axis=2))
    diff = Iw - Jw
    denom = gy * gy + gx * gx + diff * diff
    ok = denom >= eps
    safe = jnp.where(ok, denom, 1.0)
    fy = jnp.where(ok, diff * gy / safe, 0.0)
    fx = jnp.where(ok, diff * gx / safe, 0.0)
    w = gaussian_1d(sigma)
    Bh, Bw = blur_matrix(H, w), blur_matrix(W, w)
    blur = lambda f: jnp.einsum("hk,nkm,wm->nhw", Bh, f, Bw)
    return jnp.stack([blur(fy), blur(fx)], axis=1)


if __name__ == "__main__":
    key = jax.random.PRNGKey(0)
    k1, k2 = jax.random.split(key)
    N, H, W = 2, 16, 16
    I = jax.random.uniform(k1, (N, 1, H, W), dtype=jnp.float32)
    J = jax.random.uniform(k2, (N, 1, H, W), dtype=jnp.float32)

    flow = optical_flow(I, J, sigma=2.0, eps=1e-3)
    flow = jax.block_until_ready(flow)

    ref = optical_flow_ref(I, J, sigma=2.0, eps=1e-3)
    assert flow.shape == (N, 2, H, W)
    assert jnp.allclose(flow, ref, atol=2e-5, rtol=2e-5), "mismatch vs reference"

    print("KERNEL_OK")
</pallas_src>

<mosaic_0001>
module attributes {stable_mosaic.version = 11 : i64} {
  func.func @optical_flow_kernel(%arg0: i32, %arg1: memref<1x16x128xf32, #tpu.memory_space<vmem>>, %arg2: memref<1x16x128xf32, #tpu.memory_space<vmem>>, %arg3: memref<16x16xf32, #tpu.memory_space<vmem>>, %arg4: memref<128x128xf32, #tpu.memory_space<vmem>>, %arg5: memref<1x2x16x128xf32, #tpu.memory_space<vmem>>) attributes {dimension_semantics = [#tpu.dimension_semantics<parallel>], iteration_bounds = array<i64: 2>, scalar_prefetch = 0 : i64, scratch_operands = 0 : i64, tpu.core_type = #tpu.core_type<tc>, window_params = [{transform_indices = @transform_0, window_bounds = array<i64: 1, 16, 128>}, {transform_indices = @transform_1, window_bounds = array<i64: 1, 16, 128>}, {pipeline_mode = #tpu.pipeline_mode<synchronous>, transform_indices = @transform_2, window_bounds = array<i64: 16, 16>}, {pipeline_mode = #tpu.pipeline_mode<synchronous>, transform_indices = @transform_3, window_bounds = array<i64: 128, 128>}, {transform_indices = @transform_4, window_bounds = array<i64: 1, 2, 16, 128>}]} {
    %c0 = arith.constant 0 : index
    %c0_0 = arith.constant 0 : index
    %c0_1 = arith.constant 0 : index
    %0 = vector.load %arg1[%c0, %c0_0, %c0_1] : memref<1x16x128xf32, #tpu.memory_space<vmem>>, vector<1x16x128xf32>
    %c0_2 = arith.constant 0 : index
    %c0_3 = arith.constant 0 : index
    %c0_4 = arith.constant 0 : index
    %1 = vector.load %arg2[%c0_2, %c0_3, %c0_4] : memref<1x16x128xf32, #tpu.memory_space<vmem>>, vector<1x16x128xf32>
    %c0_5 = arith.constant 0 : index
    %c0_6 = arith.constant 0 : index
    %2 = vector.load %arg3[%c0_5, %c0_6] : memref<16x16xf32, #tpu.memory_space<vmem>>, vector<16x16xf32>
    %c0_7 = arith.constant 0 : index
    %c0_8 = arith.constant 0 : index
    %3 = vector.load %arg4[%c0_7, %c0_8] : memref<128x128xf32, #tpu.memory_space<vmem>>, vector<128x128xf32>
    %4 = tpu.iota {dimensions = array<i32: 1>} : vector<1x16x128xi32>
    %5 = tpu.iota {dimensions = array<i32: 2>} : vector<1x16x128xi32>
    %c15_i32 = arith.constant 15 : i32
    %6 = vector.broadcast %c15_i32 : i32 to vector<1x16x128xi32>
    %7 = arith.cmpi eq, %4, %6 : vector<1x16x128xi32>
    %c15_i32_9 = arith.constant 15 : i32
    %8 = tpu.dynamic_rotate %1 by %c15_i32_9 dim 1 : vector<1x16x128xf32>, i32 -> vector<1x16x128xf32>
    %cst = arith.constant 0.000000e+00 : f32
    %9 = vector.broadcast %cst : f32 to vector<1x16x128xf32>
    %10 = arith.select %7, %9, %8 : vector<1x16x128xi1>, vector<1x16x128xf32>
    %c0_i32 = arith.constant 0 : i32
    %11 = vector.broadcast %c0_i32 : i32 to vector<1x16x128xi32>
    %12 = arith.cmpi eq, %4, %11 : vector<1x16x128xi32>
    %c1_i32 = arith.constant 1 : i32
    %13 = tpu.dynamic_rotate %1 by %c1_i32 dim 1 : vector<1x16x128xf32>, i32 -> vector<1x16x128xf32>
    %cst_10 = arith.constant 0.000000e+00 : f32
    %14 = vector.broadcast %cst_10 : f32 to vector<1x16x128xf32>
    %15 = arith.select %12, %14, %13 : vector<1x16x128xi1>, vector<1x16x128xf32>
    %c127_i32 = arith.constant 127 : i32
    %16 = vector.broadcast %c127_i32 : i32 to vector<1x16x128xi32>
    %17 = arith.cmpi eq, %5, %16 : vector<1x16x128xi32>
    %c127_i32_11 = arith.constant 127 : i32
    %18 = tpu.dynamic_rotate %1 by %c127_i32_11 dim 2 : vector<1x16x128xf32>, i32 -> vector<1x16x128xf32>
    %cst_12 = arith.constant 0.000000e+00 : f32
    %19 = vector.broadcast %cst_12 : f32 to vector<1x16x128xf32>
    %20 = arith.select %17, %19, %18 : vector<1x16x128xi1>, vector<1x16x128xf32>
    %c0_i32_13 = arith.constant 0 : i32
    %21 = vector.broadcast %c0_i32_13 : i32 to vector<1x16x128xi32>
    %22 = arith.cmpi eq, %5, %21 : vector<1x16x128xi32>
    %c1_i32_14 = arith.constant 1 : i32
    %23 = tpu.dynamic_rotate %1 by %c1_i32_14 dim 2 : vector<1x16x128xf32>, i32 -> vector<1x16x128xf32>
    %cst_15 = arith.constant 0.000000e+00 : f32
    %24 = vector.broadcast %cst_15 : f32 to vector<1x16x128xf32>
    %25 = arith.select %22, %24, %23 : vector<1x16x128xi1>, vector<1x16x128xf32>
    %26 = arith.subf %10, %15 : vector<1x16x128xf32>
    %cst_16 = arith.constant 5.000000e-01 : f32
    %27 = vector.broadcast %cst_16 : f32 to vector<1x16x128xf32>
    %28 = arith.mulf %27, %26 : vector<1x16x128xf32>
    %29 = arith.subf %20, %25 : vector<1x16x128xf32>
    %cst_17 = arith.constant 5.000000e-01 : f32
    %30 = vector.broadcast %cst_17 : f32 to vector<1x16x128xf32>
    %31 = arith.mulf %30, %29 : vector<1x16x128xf32>
    %32 = arith.subf %0, %1 : vector<1x16x128xf32>
    %33 = arith.mulf %28, %28 : vector<1x16x128xf32>
    %34 = arith.mulf %31, %31 : vector<1x16x128xf32>
    %35 = arith.addf %33, %34 : vector<1x16x128xf32>
    %36 = arith.mulf %32, %32 : vector<1x16x128xf32>
    %37 = arith.addf %35, %36 : vector<1x16x128xf32>
    %cst_18 = arith.constant 1.000000e-03 : f32
    %38 = vector.broadcast %cst_18 : f32 to vector<1x16x128xf32>
    %39 = arith.cmpf oge, %37, %38 : vector<1x16x128xf32>
    %cst_19 = arith.constant 1.000000e+00 : f32
    %40 = vector.broadcast %cst_19 : f32 to vector<1x16x128xf32>
    %41 = arith.select %39, %37, %40 : vector<1x16x128xi1>, vector<1x16x128xf32>
    %42 = tpu.reciprocal %41 : vector<1x16x128xf32> -> vector<1x16x128xf32>
    %43 = arith.mulf %32, %42 : vector<1x16x128xf32>
    %cst_20 = arith.constant 0.000000e+00 : f32
    %44 = vector.broadcast %cst_20 : f32 to vector<1x16x128xf32>
    %45 = arith.select %39, %43, %44 : vector<1x16x128xi1>, vector<1x16x128xf32>
    %46 = arith.mulf %45, %28 : vector<1x16x128xf32>
    %47 = arith.mulf %45, %31 : vector<1x16x128xf32>
    %48 = vector.shape_cast %46 : vector<1x16x128xf32> to vector<16x128xf32>
    %49 = vector.shape_cast %47 : vector<1x16x128xf32> to vector<16x128xf32>
    %50 = tpu.concatenate %48, %49 in 0 : vector<16x128xf32>, vector<16x128xf32> -> vector<32x128xf32>
    %cst_21 = arith.constant dense<0.000000e+00> : vector<32x128xf32>
    %51 = tpu.matmul %50, %3, %cst_21 {dimension_numbers = #tpu.dot_dimension_numbers<[1], [0], [0], [1], [0, 0, 1, 1], [], []>} : vector<32x128xf32>, vector<128x128xf32>, vector<32x128xf32> -> vector<32x128xf32>
    %52 = vector.extract_strided_slice %51 {offsets = [0, 0], sizes = [16, 128], strides = [1, 1]} : vector<32x128xf32> to vector<16x128xf32>
    %53 = vector.extract_strided_slice %51 {offsets = [16, 0], sizes = [16, 128], strides = [1, 1]} : vector<32x128xf32> to vector<16x128xf32>
    %54 = tpu.concatenate %52, %53 in 1 : vector<16x128xf32>, vector<16x128xf32> -> vector<16x256xf32>
    %cst_22 = arith.constant dense<0.000000e+00> : vector<16x256xf32>
    %55 = tpu.matmul %2, %54, %cst_22 {dimension_numbers = #tpu.dot_dimension_numbers<[1], [0], [0], [1], [0, 0, 1, 1], [], []>} : vector<16x16xf32>, vector<16x256xf32>, vector<16x256xf32> -> vector<16x256xf32>
    %56 = vector.extract_strided_slice %55 {offsets = [0, 0], sizes = [16, 128], strides = [1, 1]} : vector<16x256xf32> to vector<16x128xf32>
    %c0_23 = arith.constant 0 : index
    %c0_24 = arith.constant 0 : index
    %c0_25 = arith.constant 0 : index
    %c0_26 = arith.constant 0 : index
    %57 = vector.load %arg5[%c0_23, %c0_24, %c0_25, %c0_26] : memref<1x2x16x128xf32, #tpu.memory_space<vmem>>, vector<1x1x16x128xf32>
    %58 = vector.shape_cast %57 : vector<1x1x16x128xf32> to vector<16x128xf32>
    %59 = vector.shape_cast %56 : vector<16x128xf32> to vector<1x1x16x128xf32>
    tpu.vector_store %arg5[%c0_23, %c0_24, %c0_25, %c0_26], %59 {strides = array<i32>} : memref<1x2x16x128xf32, #tpu.memory_space<vmem>>, vector<1x1x16x128xf32>,
    %60 = vector.extract_strided_slice %55 {offsets = [0, 128], sizes = [16, 128], strides = [1, 1]} : vector<16x256xf32> to vector<16x128xf32>
    %c0_27 = arith.constant 0 : index
    %c1 = arith.constant 1 : index
    %c0_28 = arith.constant 0 : index
    %c0_29 = arith.constant 0 : index
    %61 = vector.load %arg5[%c0_27, %c1, %c0_28, %c0_29] : memref<1x2x16x128xf32, #tpu.memory_space<vmem>>, vector<1x1x16x128xf32>
    %62 = vector.shape_cast %61 : vector<1x1x16x128xf32> to vector<16x128xf32>
    %63 = vector.shape_cast %60 : vector<16x128xf32> to vector<1x1x16x128xf32>
    tpu.vector_store %arg5[%c0_27, %c1, %c0_28, %c0_29], %63 {strides = array<i32>} : memref<1x2x16x128xf32, #tpu.memory_space<vmem>>, vector<1x1x16x128xf32>,
    return
  }
  func.func @transform_0(%arg0: i32) -> (i32, i32, i32) {
    %c0_i32 = arith.constant 0 : i32
    %c0_i32_0 = arith.constant 0 : i32
    %c0_i32_1 = arith.constant 0 : i32
    return %arg0, %c0_i32, %c0_i32_0 : i32, i32, i32
  }
  func.func @transform_1(%arg0: i32) -> (i32, i32, i32) {
    %c0_i32 = arith.constant 0 : i32
    %c0_i32_0 = arith.constant 0 : i32
    %c0_i32_1 = arith.constant 0 : i32
    return %arg0, %c0_i32, %c0_i32_0 : i32, i32, i32
  }
  func.func @transform_2(%arg0: i32) -> (i32, i32) {
    %c0_i32 = arith.constant 0 : i32
    %c0_i32_0 = arith.constant 0 : i32
    %c0_i32_1 = arith.constant 0 : i32
    return %c0_i32, %c0_i32_0 : i32, i32
  }
  func.func @transform_3(%arg0: i32) -> (i32, i32) {
    %c0_i32 = arith.constant 0 : i32
    %c0_i32_0 = arith.constant 0 : i32
    %c0_i32_1 = arith.constant 0 : i32
    return %c0_i32, %c0_i32_0 : i32, i32
  }
  func.func @transform_4(%arg0: i32) -> (i32, i32, i32, i32) {
    %c0_i32 = arith.constant 0 : i32
    %c0_i32_0 = arith.constant 0 : i32
    %c0_i32_1 = arith.constant 0 : i32
    %c0_i32_2 = arith.constant 0 : i32
    return %arg0, %c0_i32, %c0_i32_0, %c0_i32_1 : i32, i32, i32, i32
  }
}

</mosaic_0001>

<llo_original>
// kernel: tpu_custom_call.1
$region0: #{tpu_custom_call.1}
  #allocation0 [shape = 'u32[]', space=smem, size = 0x4, offset = 0x4, fixed_abs, tag = 'smem constant byte address 0x4 - core index']
  #allocation1 [shape = 'u32[144,128]{1,0:T(1,128)}', space=vmem, size = 0x12000, scoped, tag = 'internal scratch']
  %s0 = inlined_call_operand.hbm [shape: f32[2,16,128], index: 0, kind: input, shape index: {}]
  %s1 = inlined_call_operand.hbm [shape: f32[2,16,128], index: 1, kind: input, shape index: {}]
  %s2 = inlined_call_operand.hbm [shape: f32[16,16], index: 2, kind: input, shape index: {}]
  %s3 = inlined_call_operand.hbm [shape: f32[128,128], index: 3, kind: input, shape index: {}]
  %s4 = inlined_call_operand.hbm [shape: f32[2,2,16,128], index: 4, kind: output, shape index: {}]
  %s5 = sld [smem:[#allocation0]]
  $region65: #{tpu_custom_call.1} parent=0
    _
  %s7 = ssub.s32 1, %s5
  %s8 = scalar_select 0, %s7, %s5
  $region1: #{tpu_custom_call.1} parent=0
    #allocation2 [shape = 'u8[16384]{0}', space=vmem, size = 0x4000, scoped, tag = 'input window, operand 0']
    #allocation3 [shape = 's32[2]{0}', space=sflag, size = 0x8, scoped, tag = 'scoped memory for tpu_custom_call.1']
    #allocation4 [shape = 's32[2]{0}', space=sflag, size = 0x8, scoped, tag = 'scoped memory for tpu_custom_call.1']
    #allocation5 [shape = 'u8[16384]{0}', space=vmem, size = 0x4000, scoped, tag = 'input window, operand 1']
    #allocation6 [shape = 's32[2]{0}', space=sflag, size = 0x8, scoped, tag = 'scoped memory for tpu_custom_call.1']
    #allocation7 [shape = 'u8[8192]{0}', space=vmem, size = 0x2000, scoped, tag = 'input window, operand 2, single buffered']
    #allocation8 [shape = 'u8[65536]{0}', space=vmem, size = 0x10000, scoped, tag = 'input window, operand 3, single buffered']
    #allocation9 [shape = 's32[1]{0}', space=sflag, size = 0x4, scoped, tag = 'scoped memory for tpu_custom_call.1']
    #allocation10 [shape = 'u8[32768]{0}', space=vmem, size = 0x8000, scoped, tag = 'output window, operand 0']
    %9 = vsyncpa [#allocation3], 0
    %s10 = scalar_lea.sflag [#allocation3], 1
    %11 = vsyncpa %s10, 0
    %12 = vsyncpa [#allocation6], 0
    %s13 = scalar_lea.sflag [#allocation6], 1
    %14 = vsyncpa %s13, 0
    %15 = vsyncpa [#allocation9], 0
    %16 = vsyncpa [#allocation4], 0
    %s17 = scalar_lea.sflag [#allocation4], 1
    %18 = vsyncpa %s17, 0
    loop: start=0, step=1, limit=4
    $region2: #{tpu_custom_call.1} parent=1 // loop_pre_header
      _
    $region3: #{tpu_custom_call.1} parent=1 // loop_header
      %s20 = sphi 0, %s24
      %p21 = scmp.ge.s32.totalorder %s20, 4
      %s30 = sphi 0, %s32
      %s33 = sphi 0, %s30
      %s34 = sphi 0, %s33
      %s50 = sphi 0, %s34
      %s56 = sphi 0, %s58
      %s59 = sphi 0, %s56
      %s60 = sphi 0, %s59
      %s76 = sphi 0, %s60
      %s80 = sphi 0, %s80
      %s82 = sphi 0, %s80
      %s83 = sphi 0, %s82
      %s97 = sphi 0, %s83
      %s101 = sphi 0, %s101
      %s103 = sphi 0, %s101
      %s104 = sphi 0, %s103
      %s118 = sphi 0, %s104
      %s124 = sphi 0, %s126
      %s127 = sphi 0, %s124
      %s128 = sphi 0, %s127
      %s144 = sphi 0, %s128
    $region4: #{tpu_custom_call.1} parent=1 // loop_header_branch
      %23 = sbr.rel (%p21) target = $region8
    $region5: #{tpu_custom_call.1} parent=1 // loop_body
      %s25 = ssub.s32 %s20, 1
      %s26 = ssub.s32 %s20, 2
      %s27 = sadd.s32 %s20, 1
      %s28 = ssub.s32 %s20, %s27
      %p29 = scmp.eq.s32.totalorder %s28, 0
      %s31 = sadd.s32 %s30, 1
      %s32 = scalar_select %p29, %s30, %s31
      %p35 = pneg %p29
      %p36 = scmp.eq.s32.totalorder %s20, 1
      %p37 = por %p35, %p36
      %p38 = scmp.ne.s32.totalorder %s30, %s33
      %p39 = scmp.eq.s32.totalorder %s20, 0
      %p40 = por %p38, %p39
      %p41 = scmp.ne.s32.totalorder %s30, %s33
      %p42 = scmp.eq.s32.totalorder %s25, 1
      %p43 = por %p41, %p42
      %p44 = scmp.ne.s32.totalorder %s33, %s34
      %p45 = scmp.eq.s32.totalorder %s25, 0
      %p46 = por %p44, %p45
      %p47 = scmp.ne.s32.totalorder %s33, %s34
      %p48 = scmp.eq.s32.totalorder %s26, 1
      %p49 = por %p47, %p48
      %p51 = scmp.ne.s32.totalorder %s34, %s50
      %p52 = scmp.eq.s32.totalorder %s26, 0
      %p53 = por %p51, %p52
      %s54 = ssub.s32 %s20, %s27
      %p55 = scmp.eq.s32.totalorder %s54, 0
      %s57 = sadd.s32 %s56, 1
      %s58 = scalar_select %p55, %s56, %s57
      %p61 = pneg %p55
      %p62 = scmp.eq.s32.totalorder %s20, 1
      %p63 = por %p61, %p62
      %p64 = scmp.ne.s32.totalorder %s56, %s59
      %p65 = scmp.eq.s32.totalorder %s20, 0
      %p66 = por %p64, %p65
      %p67 = scmp.ne.s32.totalorder %s56, %s59
      %p68 = scmp.eq.s32.totalorder %s25, 1
      %p69 = por %p67, %p68
      %p70 = scmp.ne.s32.totalorder %s59, %s60
      %p71 = scmp.eq.s32.totalorder %s25, 0
      %p72 = por %p70, %p71
      %p73 = scmp.ne.s32.totalorder %s59, %s60
      %p74 = scmp.eq.s32.totalorder %s26, 1
      %p75 = por %p73, %p74
      %p77 = scmp.ne.s32.totalorder %s60, %s76
      %p78 = scmp.eq.s32.totalorder %s26, 0
      %p79 = por %p77, %p78
      %s81 = sadd.s32 %s80, 1
      %p84 = scmp.eq.s32.totalorder %s20, 1
      %p85 = scmp.ne.s32.totalorder %s80, %s82
      %p86 = scmp.eq.s32.totalorder %s20, 0
      %p87 = por %p85, %p86
      %p88 = scmp.ne.s32.totalorder %s80, %s82
      %p89 = scmp.eq.s32.totalorder %s25, 1
      %p90 = por %p88, %p89
      %p91 = scmp.ne.s32.totalorder %s82, %s83
      %p92 = scmp.eq.s32.totalorder %s25, 0
      %p93 = por %p91, %p92
      %p94 = scmp.ne.s32.totalorder %s82, %s83
      %p95 = scmp.eq.s32.totalorder %s26, 1
      %p96 = por %p94, %p95
      %p98 = scmp.ne.s32.totalorder %s83, %s97
      %p99 = scmp.eq.s32.totalorder %s26, 0
      %p100 = por %p98, %p99
      %s102 = sadd.s32 %s101, 1
      %p105 = scmp.eq.s32.totalorder %s20, 1
      %p106 = scmp.ne.s32.totalorder %s101, %s103
      %p107 = scmp.eq.s32.totalorder %s20, 0
      %p108 = por %p106, %p107
      %p109 = scmp.ne.s32.totalorder %s101, %s103
      %p110 = scmp.eq.s32.totalorder %s25, 1
      %p111 = por %p109, %p110
      %p112 = scmp.ne.s32.totalorder %s103, %s104
      %p113 = scmp.eq.s32.totalorder %s25, 0
      %p114 = por %p112, %p113
      %p115 = scmp.ne.s32.totalorder %s103, %s104
      %p116 = scmp.eq.s32.totalorder %s26, 1
      %p117 = por %p115, %p116
      %p119 = scmp.ne.s32.totalorder %s104, %s118
      %p120 = scmp.eq.s32.totalorder %s26, 0
      %p121 = por %p119, %p120
      %s122 = ssub.s32 %s20, %s27
      %p123 = scmp.eq.s32.totalorder %s122, 0
      %s125 = sadd.s32 %s124, 1
      %s126 = scalar_select %p123, %s124, %s125
      %p129 = pneg %p123
      %p130 = scmp.eq.s32.totalorder %s20, 1
      %p131 = por %p129, %p130
      %p132 = scmp.ne.s32.totalorder %s124, %s127
      %p133 = scmp.eq.s32.totalorder %s20, 0
      %p134 = por %p132, %p133
      %p135 = scmp.ne.s32.totalorder %s124, %s127
      %p136 = scmp.eq.s32.totalorder %s25, 1
      %p137 = por %p135, %p136
      %p138 = scmp.ne.s32.totalorder %s127, %s128
      %p139 = scmp.eq.s32.totalorder %s25, 0
      %p140 = por %p138, %p139
      %p141 = scmp.ne.s32.totalorder %s127, %s128
      %p142 = scmp.eq.s32.totalorder %s26, 1
      %p143 = por %p141, %p142
      %p145 = scmp.ne.s32.totalorder %s128, %s144
      %p146 = scmp.eq.s32.totalorder %s26, 0
      %p147 = por %p145, %p146
      %p148 = scmp.le.s32.totalorder 1, %s20
      %p149 = scmp.lt.s32.totalorder %s20, 3
      %p150 = pnand %p148, %p149
      %p151 = pneg %p150
      // Predicated region
      $region9: #{tpu_custom_call.1} parent=5 // pred_check
        _
      $region10: #{tpu_custom_call.1} parent=5 // pred_check_branch
        %153 = sbr.rel (%p150) target = $region12
      $region11: #{tpu_custom_call.1} parent=5 // pred_region
        %s154 = ssub.s32 %s20, 1
        // Predicated region
        $region13: #{tpu_custom_call.1} parent=11 // pred_check
          %p155 = pneg %p93
        $region14: #{tpu_custom_call.1} parent=11 // pred_check_branch
          %157 = sbr.rel (%p155) target = $region16
        $region15: #{tpu_custom_call.1} parent=11 // pred_region
          %s159 = ssub.s32 256, 256
          %160 = vsyncadd [#allocation6], %s159
          %s161 = sshll.u32 [#allocation7], 4
          %s162 = int_to_ptr.vmem [resolvable:$true] %s161
          %167 = dma.hbm_to_vmem [thread:$0]  %s2, 256, %s162, [#allocation6], 128, 128, 8
        $region16: #{tpu_custom_call.1} parent=11 // pred_fallthru
          _
        // Predicated region
        $region17: #{tpu_custom_call.1} parent=11 // pred_check
          %p168 = pneg %p114
        $region18: #{tpu_custom_call.1} parent=11 // pred_check_branch
          %170 = sbr.rel (%p168) target = $region20
        $region19: #{tpu_custom_call.1} parent=11 // pred_region
          %s172 = ssub.s32 2048, 2048
          %173 = vsyncadd [#allocation9], %s172
          %s174 = sshll.u32 [#allocation8], 4
          %s175 = int_to_ptr.vmem [resolvable:$true] %s174
          %180 = dma.hbm_to_vmem [thread:$0]  %s3, 2048, %s175, [#allocation9], 128, 128, 8
        $region20: #{tpu_custom_call.1} parent=11 // pred_fallthru
          _
      $region12: #{tpu_custom_call.1} parent=5 // pred_fallthru
        _
      %p181 = scmp.lt.s32.totalorder %s20, 2
      // Predicated region
      $region21: #{tpu_custom_call.1} parent=5 // pred_check
        %p182 = pneg %p181
      $region22: #{tpu_custom_call.1} parent=5 // pred_check_branch
        %184 = sbr.rel (%p182) target = $region24
      $region23: #{tpu_custom_call.1} parent=5 // pred_region
        // Predicated region
        $region25: #{tpu_custom_call.1} parent=23 // pred_check
          %p185 = pneg %p40
        $region26: #{tpu_custom_call.1} parent=23 // pred_check_branch
          %187 = sbr.rel (%p185) target = $region28
        $region27: #{tpu_custom_call.1} parent=23 // pred_region
          %s188 = sand.u32 %s30, 1
          %s189 = scalar_lea.sflag [#allocation3], %s188
          %s190 = sand.u32 %s30, 1
          %s191 = smul.addr %s190, 16
          %s192 = scalar_lea.vmem [#allocation2], %s191
          %s194 = ssub.s32 256, 256
          %195 = vsyncadd %s189, %s194
          %s196 = smul.addr %s20, 2
          %s197 = smul.addr %s196, 128
          %s198 = scalar_lea.hbm %s0, %s197
          %s199 = sshll.u32 %s192, 4
          %s200 = int_to_ptr.vmem [resolvable:$true] %s199
          %205 = dma.hbm_to_vmem [thread:$0]  %s198, 256, %s200, %s189, 128, 128, 8
        $region28: #{tpu_custom_call.1} parent=23 // pred_fallthru
          _
        // Predicated region
        $region29: #{tpu_custom_call.1} parent=23 // pred_check
          %p206 = pneg %p66
        $region30: #{tpu_custom_call.1} parent=23 // pred_check_branch
          %208 = sbr.rel (%p206) target = $region32
        $region31: #{tpu_custom_call.1} parent=23 // pred_region
          %s209 = sand.u32 %s20, 1
          %s210 = scalar_lea.sflag [#allocation6], %s209
          %s211 = sand.u32 %s56, 1
          %s212 = smul.addr %s211, 16
          %s213 = scalar_lea.vmem [#allocation5], %s212
          %s215 = ssub.s32 256, 256
          %216 = vsyncadd %s210, %s215
          %s217 = smul.addr %s20, 2
          %s218 = smul.addr %s217, 128
          %s219 = scalar_lea.hbm %s1, %s218
          %s220 = sshll.u32 %s213, 4
          %s221 = int_to_ptr.vmem [resolvable:$true] %s220
          %226 = dma.hbm_to_vmem [thread:$0]  %s219, 256, %s221, %s210, 128, 128, 8
        $region32: #{tpu_custom_call.1} parent=23 // pred_fallthru
          _
      $region24: #{tpu_custom_call.1} parent=5 // pred_fallthru
        _
      %p227 = scmp.le.s32.totalorder 1, %s20
      %p228 = scmp.lt.s32.totalorder %s20, 3
      %p229 = pnand %p227, %p228
      %p230 = pneg %p229
      // Predicated region
      $region33: #{tpu_custom_call.1} parent=5 // pred_check
        _
      $region34: #{tpu_custom_call.1} parent=5 // pred_check_branch
        %232 = sbr.rel (%p229) target = $region36
      $region35: #{tpu_custom_call.1} parent=5 // pred_region
        %s233 = ssub.s32 %s20, 1
        %s234 = sand.u32 %s33, 1
        %s235 = scalar_lea.sflag [#allocation3], %s234
        %s236 = sand.u32 %s33, 1
        %s237 = smul.addr %s236, 16
        %s238 = scalar_lea.vmem [#allocation2], %s237
        // Predicated region
        $region37: #{tpu_custom_call.1} parent=35 // pred_check
          %p239 = pneg %p46
        $region38: #{tpu_custom_call.1} parent=35 // pred_check_branch
          %241 = sbr.rel (%p239) target = $region40
        $region39: #{tpu_custom_call.1} parent=35 // pred_region
          %242 = dma.done %s235, 256
        $region40: #{tpu_custom_call.1} parent=35 // pred_fallthru
          _
        %s243 = sand.u32 %s25, 1
        %s244 = scalar_lea.sflag [#allocation6], %s243
        %s245 = sand.u32 %s59, 1
        %s246 = smul.addr %s245, 16
        %s247 = scalar_lea.vmem [#allocation5], %s246
        // Predicated region
        $region41: #{tpu_custom_call.1} parent=35 // pred_check
          %p248 = pneg %p72
        $region42: #{tpu_custom_call.1} parent=35 // pred_check_branch
          %250 = sbr.rel (%p248) target = $region44
        $region43: #{tpu_custom_call.1} parent=35 // pred_region
          %251 = dma.done %s244, 256
        $region44: #{tpu_custom_call.1} parent=35 // pred_fallthru
          _
        // Predicated region
        $region45: #{tpu_custom_call.1} parent=35 // pred_check
          %p252 = pneg %p93
        $region46: #{tpu_custom_call.1} parent=35 // pred_check_branch
          %254 = sbr.rel (%p252) target = $region48
        $region47: #{tpu_custom_call.1} parent=35 // pred_region
          %255 = dma.done [#allocation6], 256
        $region48: #{tpu_custom_call.1} parent=35 // pred_fallthru
          _
        // Predicated region
        $region49: #{tpu_custom_call.1} parent=35 // pred_check
          %p256 = pneg %p114
        $region50: #{tpu_custom_call.1} parent=35 // pred_check_branch
          %258 = sbr.rel (%p256) target = $region52
        $region51: #{tpu_custom_call.1} parent=35 // pred_region
          %259 = dma.done [#allocation9], 2048
        $region52: #{tpu_custom_call.1} parent=35 // pred_fallthru
          _
        %s260 = sand.u32 %s33, 1
        %s261 = scalar_lea.sflag [#allocation3], %s260
        %s262 = sand.u32 %s33, 1
        %s263 = smul.addr %s262, 16
        %s264 = scalar_lea.vmem [#allocation2], %s263
        %p265 = pneg %p46
        %p266 = pneg %p43
        %s267 = sand.u32 %s25, 1
        %s268 = scalar_lea.sflag [#allocation6], %s267
        %s269 = sand.u32 %s59, 1
        %s270 = smul.addr %s269, 16
        %s271 = scalar_lea.vmem [#allocation5], %s270
        %p272 = pneg %p72
        %p273 = pneg %p69
        %p274 = pneg %p93
        %p275 = pneg %p90
        %p276 = pneg %p114
        %p277 = pneg %p111
        %p278 = pneg %p140
        %p279 = pneg %p137
        %s280 = sand.u32 %s127, 1
        %s281 = scalar_lea.sflag [#allocation4], %s280
        %s282 = sand.u32 %s127, 1
        %s283 = smul.addr %s282, 32
        %s284 = scalar_lea.vmem [#allocation10], %s283
        %v285 = vld [vmem:[%s238] sm:$0xff]
        %v286 = vld [vmem:[%s238 + $0x8] sm:$0xff]
        %v287 = vld [vmem:[%s247] sm:$0xff]
        %v288 = vld [vmem:[%s247 + $0x8] sm:$0xff]
        %v289 = vld [vmem:[#allocation7] sm:$0xff]
        %v290 = vld [vmem:[#allocation7 + $0x8] sm:$0xff]
        %v291 = vld [vmem:[#allocation8] sm:$0xff]
        %v292 = vld [vmem:[#allocation8 + $0x8] sm:$0xff]
        %v293 = vld [vmem:[#allocation8 + $0x10] sm:$0xff]
        %v294 = vld [vmem:[#allocation8 + $0x18] sm:$0xff]
        %v295 = vld [vmem:[#allocation8 + $0x20] sm:$0xff]
        %v296 = vld [vmem:[#allocation8 + $0x28] sm:$0xff]
        %v297 = vld [vmem:[#allocation8 + $0x30] sm:$0xff]
        %v298 = vld [vmem:[#allocation8 + $0x38] sm:$0xff]
        %v299 = vld [vmem:[#allocation8 + $0x40] sm:$0xff]
        %v300 = vld [vmem:[#allocation8 + $0x48] sm:$0xff]
        %v301 = vld [vmem:[#allocation8 + $0x50] sm:$0xff]
        %v302 = vld [vmem:[#allocation8 + $0x58] sm:$0xff]
        %v303 = vld [vmem:[#allocation8 + $0x60] sm:$0xff]
        %v304 = vld [vmem:[#allocation8 + $0x68] sm:$0xff]
        %v305 = vld [vmem:[#allocation8 + $0x70] sm:$0xff]
        %v306 = vld [vmem:[#allocation8 + $0x78] sm:$0xff]
        %v307 = vlaneseq
        %v308 = vshrl.u32 %v307, 7
        %v309 = vadd.s32 %v308, 8
        %v310 = vlaneseq
        %v311 = vand.u32 %v310, 127
        %vm312 = vcmp.eq.s32.totalorder %v308, 15
        %vm313 = vcmp.eq.s32.totalorder %v309, 15
        %v314 = vrot.slane %v287, 1
        %v315 = vrot.slane %v288, 1
        %vm316 = vcmp.lt.s32.totalorder %v308, 7
        %v317 = vsel %vm316, %v314, %v315
        %v318 = vsel %vm316, %v315, %v314
        %v319 = vsel %vm312, 0.0, %v317
        %v320 = vsel %vm313, 0.0, %v318
        %vm321 = vcmp.eq.s32.totalorder %v308, 0
        %vm322 = vcmp.eq.s32.totalorder %v309, 0
        %v323 = vrot.slane %v287, 7
        %v324 = vrot.slane %v288, 7
        %vm325 = vcmp.lt.s32.totalorder %v308, 1
        %v326 = vsel %vm325, %v323, %v324
        %v327 = vsel %vm325, %v324, %v323
        %v328 = vsel %vm321, 0.0, %v327
        %v329 = vsel %vm322, 0.0, %v326
        %vm330 = vcmp.eq.s32.totalorder %v311, 127
        %331 = vrot.lane.b32.xlu0 %v287, 127
        %v332 = vpop.permute.xlu0 %331
        %333 = vrot.lane.b32.xlu0 %v288, 127
        %v334 = vpop.permute.xlu0 %333
        %v335 = vsel %vm330, 0.0, %v332
        %v336 = vsel %vm330, 0.0, %v334
        %vm337 = vcmp.eq.s32.totalorder %v311, 0
        %338 = vrot.lane.b32.xlu0 %v287, 1
        %v339 = vpop.permute.xlu0 %338
        %340 = vrot.lane.b32.xlu0 %v288, 1
        %v341 = vpop.permute.xlu0 %340
        %v342 = vsel %vm337, 0.0, %v339
        %v343 = vsel %vm337, 0.0, %v341
        %v344 = vsub.f32 %v319, %v328
        %v345 = vsub.f32 %v320, %v329
        %v346 = vmul.f32 %v344, 0.5
        %v347 = vmul.f32 %v345, 0.5
        %v348 = vsub.f32 %v335, %v342
        %v349 = vsub.f32 %v336, %v343
        %v350 = vmul.f32 %v348, 0.5
        %v351 = vmul.f32 %v349, 0.5
        %v352 = vsub.f32 %v285, %v287
        %v353 = vsub.f32 %v286, %v288
        %v354 = vmul.f32 %v346, %v346
        %v355 = vmul.f32 %v347, %v347
        %v356 = vmul.f32 %v350, %v350
        %v357 = vmul.f32 %v351, %v351
        %v358 = vadd.f32 %v354, %v356
        %v359 = vadd.f32 %v355, %v357
        %v360 = vmul.f32 %v352, %v352
        %v361 = vmul.f32 %v353, %v353
        %v362 = vadd.f32 %v358, %v360
        %v363 = vadd.f32 %v359, %v361
        %vm364 = vcmp.ge.f32.partialorder %v362, 0.001
        %vm365 = vcmp.ge.f32.partialorder %v363, 0.001
        %v366 = vsel %vm364, %v362, 1.0
        %v367 = vsel %vm365, %v363, 1.0
        %v368 = vrcp.pop %v366
        %v369 = vrcp.pop %v367
        %v370 = vmul.f32 %v352, %v368
        %v371 = vmul.f32 %v353, %v369
        %v372 = vsel %vm364, %v370, 0.0
        %v373 = vsel %vm365, %v371, 0.0
        %v374 = vmul.f32 %v372, %v346
        %v375 = vmul.f32 %v373, %v347
        %v376 = vmul.f32 %v372, %v350
        %v377 = vmul.f32 %v373, %v351
        %378 = vmatprep.subr.mxu0 0.0
        %379 = vmatpush1.msra.mxu0 %v291
        %380 = vmatprep.subr.mxu0 0.0
        %381 = vmatpush1.msra.mxu0 %v292
        %382 = vmatprep.subr.mxu0 0.0
        %383 = vmatpush1.msra.mxu0 %v293
        %384 = vmatprep.subr.mxu0 0.0
        %385 = vmatpush1.msra.mxu0 %v294
        %386 = vmatprep.subr.mxu0 0.0
        %387 = vmatpush1.msra.mxu0 %v295
        %388 = vmatprep.subr.mxu0 0.0
        %389 = vmatpush1.msra.mxu0 %v296
        %390 = vmatprep.subr.mxu0 0.0
        %391 = vmatpush1.msra.mxu0 %v297
        %392 = vmatprep.subr.mxu0 0.0
        %393 = vmatpush1.msra.mxu0 %v298
        %394 = vmatprep.subr.mxu0 0.0
        %395 = vmatpush1.msra.mxu0 %v299
        %396 = vmatprep.subr.mxu0 0.0
        %397 = vmatpush1.msra.mxu0 %v300
        %398 = vmatprep.subr.mxu0 0.0
        %399 = vmatpush1.msra.mxu0 %v301
        %400 = vmatprep.subr.mxu0 0.0
        %401 = vmatpush1.msra.mxu0 %v302
        %402 = vmatprep.subr.mxu0 0.0
        %403 = vmatpush1.msra.mxu0 %v303
        %404 = vmatprep.subr.mxu0 0.0
        %405 = vmatpush1.msra.mxu0 %v304
        %406 = vmatprep.subr.mxu0 0.0
        %407 = vmatpush1.msra.mxu0 %v305
        %408 = vmatprep.subr.mxu0 0.0
        %409 = vmatpush1.msra.mxu0 %v306
        %410 = vmatprep.subr.mxu0 0.0
        %411 = vmatpush1.msra.mxu0 0.0
        %412 = vmatprep.subr.mxu0 0.0
        %413 = vmatpush1.msra.mxu0 0.0
        %414 = vmatprep.subr.mxu0 0.0
        %415 = vmatpush1.msra.mxu0 0.0
        %416 = vmatprep.subr.mxu0 0.0
        %417 = vmatpush1.msra.mxu0 0.0
        %418 = vmatprep.subr.mxu0 0.0
        %419 = vmatpush1.msra.mxu0 0.0
        %420 = vmatprep.subr.mxu0 0.0
        %421 = vmatpush1.msra.mxu0 0.0
        %422 = vmatprep.subr.mxu0 0.0
        %423 = vmatpush1.msra.mxu0 0.0
        %424 = vmatprep.subr.mxu0 0.0
        %425 = vmatpush1.msra.mxu0 0.0
        %426 = vmatprep.subr.mxu0 0.0
        %427 = vmatpush1.msra.mxu0 0.0
        %428 = vmatprep.subr.mxu0 0.0
        %429 = vmatpush1.msra.mxu0 0.0
        %430 = vmatprep.subr.mxu0 0.0
        %431 = vmatpush1.msra.mxu0 0.0
        %432 = vmatprep.subr.mxu0 0.0
        %433 = vmatpush1.msra.mxu0 0.0
        %434 = vmatprep.subr.mxu0 0.0
        %435 = vmatpush1.msra.mxu0 0.0
        %436 = vmatprep.subr.mxu0 0.0
        %437 = vmatpush1.msra.mxu0 0.0
        %438 = vmatprep.subr.mxu0 0.0
        %439 = vmatpush1.msra.mxu0 0.0
        %440 = vmatprep.subr.mxu0 0.0
        %441 = vmatpush1.msra.mxu0 0.0
        %442 = vmatprep.mubr.f32.mxu0 0.0
        %443 = vmatmul.mubr.f32.gmra.mrb[0].mxu0 %v374
        %v444 = vpop.f32.mrb[0].mxu0
        %v445 = vadd.f32 0.0, %v444
        %v446 = vpop.f32.mrb[0].mxu0
        %447 = vmatprep.mubr.f32.mxu0 0.0
        %448 = vmatmul.mubr.f32.gmra.mrb[0].mxu0 %v375
        %v449 = vpop.f32.mrb[0].mxu0
        %v450 = vadd.f32 0.0, %v449
        %v451 = vpop.f32.mrb[0].mxu0
        %452 = vmatprep.mubr.f32.mxu0 0.0
        %453 = vmatmul.mubr.f32.gmra.mrb[0].mxu0 %v376
        %v454 = vpop.f32.mrb[0].mxu0
        %v455 = vadd.f32 0.0, %v454
        %v456 = vpop.f32.mrb[0].mxu0
        %457 = vmatprep.mubr.f32.mxu0 0.0
        %458 = vmatmul.mubr.f32.gmra.mrb[0].mxu0 %v377
        %v459 = vpop.f32.mrb[0].mxu0
        %v460 = vadd.f32 0.0, %v459
        %v461 = vpop.f32.mrb[0].mxu0
        %462 = vdwg.mxu0
        %vm463 = vcmask 130048
        %v465 = vsel %vm463, %v289, 0
        %v468 = vsel %vm463, %v290, 0
        %470 = vmatprep.subr.mxu0 %v455
        %471 = vmatpush1.msra.mxu0 %v445
        %472 = vmatprep.subr.mxu0 %v460
        %473 = vmatpush1.msra.mxu0 %v450
        %474 = vmatprep.subr.mxu0 0.0
        %475 = vmatpush1.msra.mxu0 0.0
        %476 = vmatprep.subr.mxu0 0.0
        %477 = vmatpush1.msra.mxu0 0.0
        %478 = vmatprep.subr.mxu0 0.0
        %479 = vmatpush1.msra.mxu0 0.0
        %480 = vmatprep.subr.mxu0 0.0
        %481 = vmatpush1.msra.mxu0 0.0
        %482 = vmatprep.subr.mxu0 0.0
        %483 = vmatpush1.msra.mxu0 0.0
        %484 = vmatprep.subr.mxu0 0.0
        %485 = vmatpush1.msra.mxu0 0.0
        %486 = vmatprep.subr.mxu0 0.0
        %487 = vmatpush1.msra.mxu0 0.0
        %488 = vmatprep.subr.mxu0 0.0
        %489 = vmatpush1.msra.mxu0 0.0
        %490 = vmatprep.subr.mxu0 0.0
        %491 = vmatpush1.msra.mxu0 0.0
        %492 = vmatprep.subr.mxu0 0.0
        %493 = vmatpush1.msra.mxu0 0.0
        %494 = vmatprep.subr.mxu0 0.0
        %495 = vmatpush1.msra.mxu0 0.0
        %496 = vmatprep.subr.mxu0 0.0
        %497 = vmatpush1.msra.mxu0 0.0
        %498 = vmatprep.subr.mxu0 0.0
        %499 = vmatpush1.msra.mxu0 0.0
        %500 = vmatprep.subr.mxu0 0.0
        %501 = vmatpush1.msra.mxu0 0.0
        %502 = vmatprep.subr.mxu0 0.0
        %503 = vmatpush1.msra.mxu0 0.0
        %504 = vmatprep.subr.mxu0 0.0
        %505 = vmatpush1.msra.mxu0 0.0
        %506 = vmatprep.subr.mxu0 0.0
        %507 = vmatpush1.msra.mxu0 0.0
        %508 = vmatprep.subr.mxu0 0.0
        %509 = vmatpush1.msra.mxu0 0.0
        %510 = vmatprep.subr.mxu0 0.0
        %511 = vmatpush1.msra.mxu0 0.0
        %512 = vmatprep.subr.mxu0 0.0
        %513 = vmatpush1.msra.mxu0 0.0
        %514 = vmatprep.subr.mxu0 0.0
        %515 = vmatpush1.msra.mxu0 0.0
        %516 = vmatprep.subr.mxu0 0.0
        %517 = vmatpush1.msra.mxu0 0.0
        %518 = vmatprep.subr.mxu0 0.0
        %519 = vmatpush1.msra.mxu0 0.0
        %520 = vmatprep.subr.mxu0 0.0
        %521 = vmatpush1.msra.mxu0 0.0
        %522 = vmatprep.subr.mxu0 0.0
        %523 = vmatpush1.msra.mxu0 0.0
        %524 = vmatprep.subr.mxu0 0.0
        %525 = vmatpush1.msra.mxu0 0.0
        %526 = vmatprep.subr.mxu0 0.0
        %527 = vmatpush1.msra.mxu0 0.0
        %528 = vmatprep.subr.mxu0 0.0
        %529 = vmatpush1.msra.mxu0 0.0
        %530 = vmatprep.subr.mxu0 0.0
        %531 = vmatpush1.msra.mxu0 0.0
        %532 = vmatprep.subr.mxu0 0.0
        %533 = vmatpush1.msra.mxu0 0.0
        %534 = vmatprep.mubr.f32.mxu0 0.0
        %535 = vmatmul.mubr.f32.gmra.mrb[0].mxu0 %v465
        %v536 = vpop.f32.mrb[0].mxu0
        %v537 = vadd.f32 0.0, %v536
        %v538 = vpop.f32.mrb[0].mxu0
        %v539 = vadd.f32 0.0, %v538
        %540 = vmatprep.mubr.f32.mxu0 0.0
        %541 = vmatmul.mubr.f32.gmra.mrb[0].mxu0 %v468
        %v542 = vpop.f32.mrb[0].mxu0
        %v543 = vadd.f32 0.0, %v542
        %v544 = vpop.f32.mrb[0].mxu0
        %v545 = vadd.f32 0.0, %v544
        %546 = vdwg.mxu0
        %547 = vst [vmem:[%s284] sm:$0xff] %v537
        %548 = vst [vmem:[%s284 + $0x8] sm:$0xff] %v543
        %s549 = scalar_lea.vmem %s284, 16 [#allocation10]
        %550 = vst [vmem:[%s549] sm:$0xff] %v539
        %551 = vst [vmem:[%s549 + $0x8] sm:$0xff] %v545
        %s552 = sand.u32 %s127, 1
        %s553 = scalar_lea.sflag [#allocation4], %s552
        %s554 = sand.u32 %s127, 1
        %s555 = smul.addr %s554, 32
        %s556 = scalar_lea.vmem [#allocation10], %s555
        // Predicated region
        $region53: #{tpu_custom_call.1} parent=35 // pred_check
          %p557 = pneg %p137
        $region54: #{tpu_custom_call.1} parent=35 // pred_check_branch
          %559 = sbr.rel (%p557) target = $region56
        $region55: #{tpu_custom_call.1} parent=35 // pred_region
          %s561 = ssub.s32 512, 512
          %562 = vsyncadd %s553, %s561
          %s563 = smul.addr %s25, 4
          %s564 = smul.addr %s563, 128
          %s565 = scalar_lea.hbm %s4, %s564
          %s566 = sshll.u32 %s556, 4
          %s567 = int_to_ptr.vmem [resolvable:$true] %s566
          %572 = dma.vmem_to_hbm [thread:$0]  %s567, 512, %s565, %s553, 128, 128, 8
        $region56: #{tpu_custom_call.1} parent=35 // pred_fallthru
          _
      $region36: #{tpu_custom_call.1} parent=5 // pred_fallthru
        _
      %p573 = scmp.le.s32.totalorder 2, %s20
      // Predicated region
      $region57: #{tpu_custom_call.1} parent=5 // pred_check
        %p574 = pneg %p573
      $region58: #{tpu_custom_call.1} parent=5 // pred_check_branch
        %576 = sbr.rel (%p574) target = $region60
      $region59: #{tpu_custom_call.1} parent=5 // pred_region
        %s577 = ssub.s32 %s20, 2
        // Predicated region
        $region61: #{tpu_custom_call.1} parent=59 // pred_check
          %p578 = pneg %p143
        $region62: #{tpu_custom_call.1} parent=59 // pred_check_branch
          %580 = sbr.rel (%p578) target = $region64
        $region63: #{tpu_custom_call.1} parent=59 // pred_region
          %s581 = sand.u32 %s128, 1
          %s582 = scalar_lea.sflag [#allocation4], %s581
          %s583 = sand.u32 %s128, 1
          %s584 = smul.addr %s583, 32
          %s585 = scalar_lea.vmem [#allocation10], %s584
          %586 = dma.done %s582, 512
        $region64: #{tpu_custom_call.1} parent=59 // pred_fallthru
          _
      $region60: #{tpu_custom_call.1} parent=5 // pred_fallthru
        _
    $region6: #{tpu_custom_call.1} parent=1 // loop_footer
      %s24 = sadd.s32 1, %s20
    $region7: #{tpu_custom_call.1} parent=1 // loop_footer_branch
      %19 = sbr.rel target = $region3
    $region8: #{tpu_custom_call.1} parent=1 // loop_exit
      _
    %587 = vsyncpa [#allocation3], 1
    %s588 = scalar_lea.sflag [#allocation3], 1
    %589 = vsyncpa %s588, 1
    %590 = vsyncpa [#allocation6], 1
    %s591 = scalar_lea.sflag [#allocation6], 1
    %592 = vsyncpa %s591, 1
    %593 = vsyncpa [#allocation9], 1
    %594 = vsyncpa [#allocation4], 1
    %s595 = scalar_lea.sflag [#allocation4], 1
    %596 = vsyncpa %s595, 1

</llo_original>
